<compile_context>
chip_gen: v7x
topology: tpu7x:2x2x1
jax: 0.10.0
libtpu: 0.0.40
codegen_flags: <defaults>
</compile_context>

<pallas_src>
import functools

import jax
import jax.numpy as jnp
from jax.experimental import pallas as pl
from jax.experimental.pallas import tpu as pltpu


def _round_up(x, m):
    return ((x + m - 1) // m) * m


def _num_tensorcores():
    """Best-effort detection of TensorCores per chip (1 on v5e/v6e, 2 on
    megacore / v7x parts).  Only used to decide whether to split the batch
    tile so `dimension_semantics=('parallel',)` has >= 2 steps to shard."""
    try:
        kind = jax.devices()[0].device_kind.lower()
        return 2 if any(t in kind for t in ("v7", "v5p", "v4")) else 1
    except Exception:  # pragma: no cover - defensive
        return 1


def mlp_policy_mean_kernel(x_ref, w1_ref, b1_ref, w2_ref, b2_ref, wo_ref, bo_ref,
                           mean_ref, *, matmul_dtype):
    """Feature-major MLP forward.

    x_ref:   (ob_dim, tm)  matmul_dtype   -- obs tile, batch on lanes
    w*_ref:  transposed weights, pre-cast to matmul_dtype (VMEM resident)
    b*_ref:  (out_features, 1) float32
    mean_ref:(ac_dim, tm)  float32        -- lane-dense output tile
    """
    # Hidden layer 1: Linear + Tanh (MXU matmul, f32 accumulation; tanh in f32).
    h = jnp.tanh(
        jnp.dot(w1_ref[...], x_ref[...], preferred_element_type=jnp.float32)
        + b1_ref[...])
    # Hidden layer 2: Linear + Tanh.
    h = jnp.tanh(
        jnp.dot(w2_ref[...], h.astype(matmul_dtype),
                preferred_element_type=jnp.float32)
        + b2_ref[...])
    # Output layer: Linear (identity activation).  N = tm -> lane-dense store.
    mu = (jnp.dot(wo_ref[...], h.astype(matmul_dtype),
                  preferred_element_type=jnp.float32)
          + bo_ref[...])
    mean_ref[...] = mu.astype(mean_ref.dtype)


def mlp_policy_forward(obs, params, *, tm=None, matmul_dtype=jnp.bfloat16):
    """obs: [B, ob_dim] float32.  Returns (mean [B, ac_dim], std [B, ac_dim])."""
    w1, b1, w2, b2, wo, bo, logstd = params
    B, ob_dim = obs.shape
    size = w1.shape[1]
    ac_dim = wo.shape[1]

    # ---- pick batch tile (lane axis) ------------------------------------
    # Pad the batch to a multiple of 128 lanes so all loads/stores are
    # unmasked full vreg width; tile = whole batch (1 grid step) on 1-TC
    # chips, split >= 2 ways on 2-TC chips, capped at 4096 lanes.
    B128 = _round_up(B, 128)
    if tm is None:
        ncores = _num_tensorcores()
        tm = min(4096, _round_up(pl.cdiv(B128, ncores), 128))
    else:
        tm = _round_up(tm, 128)
    B_pad = _round_up(B128, tm)
    grid = (B_pad // tm,)

    # ---- wrapper-side layout + dtype prep (no per-step VPU casts) --------
    obs_c = obs.astype(matmul_dtype)
    if B_pad != B:
        obs_c = jnp.pad(obs_c, ((0, B_pad - B), (0, 0)))
    obs_t = obs_c.T                                   # (ob_dim, B_pad)
    w1t = w1.T.astype(matmul_dtype)                   # (size, ob_dim)
    w2t = w2.T.astype(matmul_dtype)                   # (size, size)
    wot = wo.T.astype(matmul_dtype)                   # (ac_dim, size)
    b1t = b1.reshape(size, 1).astype(jnp.float32)
    b2t = b2.reshape(size, 1).astype(jnp.float32)
    bot = bo.reshape(ac_dim, 1).astype(jnp.float32)

    full = lambda shape: pl.BlockSpec(shape, lambda i: (0, 0))

    # ---- realistic VMEM budget -------------------------------------------
    in_isz = jnp.dtype(matmul_dtype).itemsize
    weight_bytes = in_isz * (size * ob_dim + size * size + ac_dim * size) \
        + 4 * (2 * size + ac_dim)
    io_bytes = 2 * (in_isz * ob_dim * tm + 4 * ac_dim * tm)   # double-buffered tiles
    act_bytes = 2 * 4 * size * tm                             # live f32 hidden activations
    vmem_limit = min(64 * 1024 * 1024,
                     max(4 * 1024 * 1024,
                         2 * (weight_bytes + io_bytes + act_bytes)))

    mean_t = pl.pallas_call(
        functools.partial(mlp_policy_mean_kernel, matmul_dtype=matmul_dtype),
        out_shape=jax.ShapeDtypeStruct((ac_dim, B_pad), jnp.float32),
        grid_spec=pltpu.PrefetchScalarGridSpec(
            num_scalar_prefetch=0,
            grid=grid,
            in_specs=[
                pl.BlockSpec((ob_dim, tm), lambda i: (0, i)),   # obs tile
                full((size, ob_dim)),                           # W1^T
                full((size, 1)),                                # b1
                full((size, size)),                             # W2^T
                full((size, 1)),                                # b2
                full((ac_dim, size)),                           # W_out^T
                full((ac_dim, 1)),                              # b_out
            ],
            out_specs=pl.BlockSpec((ac_dim, tm), lambda i: (0, i)),  # lane-dense mean
        ),
        compiler_params=pltpu.CompilerParams(
            dimension_semantics=("parallel",),
            vmem_limit_bytes=int(vmem_limit),
        ),
    )(obs_t, w1t, b1t, w2t, b2t, wot, bot)

    mean = mean_t[:, :B].T                            # (B, ac_dim) float32
    # std = exp(logstd) is batch independent: compute once outside the kernel.
    std = jnp.broadcast_to(jnp.exp(logstd), mean.shape)
    return mean, std


def init_params(key, ob_dim, ac_dim, size):
    """Deterministic init matching PyTorch nn.Linear defaults:
    W, b ~ U(-1/sqrt(fan_in), 1/sqrt(fan_in)); logstd = zeros(ac_dim)."""
    keys = jax.random.split(key, 6)

    def linear(kw, kb, fan_in, fan_out):
        bound = 1.0 / jnp.sqrt(jnp.float32(fan_in))
        # stored as [in, out] (pre-transposed relative to torch's [out, in])
        w = jax.random.uniform(kw, (fan_in, fan_out), jnp.float32, -bound, bound)
        b = jax.random.uniform(kb, (1, fan_out), jnp.float32, -bound, bound)
        return w, b

    w1, b1 = linear(keys[0], keys[1], ob_dim, size)
    w2, b2 = linear(keys[2], keys[3], size, size)
    wo, bo = linear(keys[4], keys[5], size, ac_dim)
    logstd = jnp.zeros((1, ac_dim), jnp.float32)
    return (w1, b1, w2, b2, wo, bo, logstd)


def reference_forward(obs, params):
    w1, b1, w2, b2, wo, bo, logstd = params
    h = jnp.tanh(obs @ w1 + b1)
    h = jnp.tanh(h @ w2 + b2)
    mu = h @ wo + bo
    std = jnp.broadcast_to(jnp.exp(logstd), mu.shape)
    return mu, std


if __name__ == "__main__":
    # MLPPolicy(ac_dim=8, ob_dim=16, n_layers=2, size=32, discrete=False)
    ob_dim, ac_dim, size = 16, 8, 32

    key = jax.random.PRNGKey(0)
    k_obs, k_params, k_obs2 = jax.random.split(key, 3)
    params = init_params(k_params, ob_dim, ac_dim, size)

    # Small batch, f32 MXU operands: exact path, tight tolerance.
    obs = jax.random.normal(k_obs, (16, ob_dim), jnp.float32)
    mean_f32, std_f32 = mlp_policy_forward(obs, params, matmul_dtype=jnp.float32)
    jax.block_until_ready((mean_f32, std_f32))
    mean_ref, std_ref = reference_forward(obs, params)
    assert jnp.allclose(mean_f32, mean_ref, atol=1e-5, rtol=1e-5)
    assert jnp.allclose(std_f32, std_ref, atol=1e-6, rtol=1e-6)

    # Small batch, default bf16 MXU operands (f32 accumulation), looser tol.
    mean_bf, std_bf = mlp_policy_forward(obs, params)
    jax.block_until_ready((mean_bf, std_bf))
    assert jnp.allclose(mean_bf, mean_ref, atol=5e-2, rtol=5e-2)
    assert jnp.allclose(std_bf, std_ref, atol=1e-6, rtol=1e-6)

    # Larger, ragged batch: exercises lane padding + slicing + default bf16 path.
    obs2 = jax.random.normal(k_obs2, (1000, ob_dim), jnp.float32)
    mean2, std2 = mlp_policy_forward(obs2, params)
    jax.block_until_ready((mean2, std2))
    mean2_ref, std2_ref = reference_forward(obs2, params)
    assert jnp.allclose(mean2, mean2_ref, atol=5e-2, rtol=5e-2)
    assert jnp.allclose(std2, std2_ref, atol=1e-6, rtol=1e-6)

    # Same ragged batch in f32 for a bit-tight check of the tiling/padding logic.
    mean2_f32, _ = mlp_policy_forward(obs2, params, matmul_dtype=jnp.float32)
    jax.block_until_ready(mean2_f32)
    assert jnp.allclose(mean2_f32, mean2_ref, atol=1e-5, rtol=1e-5)

    print("KERNEL_OK")
</pallas_src>

<mosaic_0001>
module attributes {stable_mosaic.version = 11 : i64} {
  func.func @mlp_policy_mean_kernel(%arg0: i32, %arg1: memref<16x128xf32, #tpu.memory_space<vmem>>, %arg2: memref<32x16xf32, #tpu.memory_space<vmem>>, %arg3: memref<32x1xf32, #tpu.memory_space<vmem>>, %arg4: memref<32x32xf32, #tpu.memory_space<vmem>>, %arg5: memref<32x1xf32, #tpu.memory_space<vmem>>, %arg6: memref<8x32xf32, #tpu.memory_space<vmem>>, %arg7: memref<8x1xf32, #tpu.memory_space<vmem>>, %arg8: memref<8x128xf32, #tpu.memory_space<vmem>>) attributes {dimension_semantics = [#tpu.dimension_semantics<parallel>], iteration_bounds = array<i64: 1>, scalar_prefetch = 0 : i64, scratch_operands = 0 : i64, tpu.core_type = #tpu.core_type<tc>, window_params = [{transform_indices = @transform_0, window_bounds = array<i64: 16, 128>}, {pipeline_mode = #tpu.pipeline_mode<synchronous>, transform_indices = @transform_1, window_bounds = array<i64: 32, 16>}, {pipeline_mode = #tpu.pipeline_mode<synchronous>, transform_indices = @transform_2, window_bounds = array<i64: 32, 1>}, {pipeline_mode = #tpu.pipeline_mode<synchronous>, transform_indices = @transform_3, window_bounds = array<i64: 32, 32>}, {pipeline_mode = #tpu.pipeline_mode<synchronous>, transform_indices = @transform_4, window_bounds = array<i64: 32, 1>}, {pipeline_mode = #tpu.pipeline_mode<synchronous>, transform_indices = @transform_5, window_bounds = array<i64: 8, 32>}, {pipeline_mode = #tpu.pipeline_mode<synchronous>, transform_indices = @transform_6, window_bounds = array<i64: 8, 1>}, {transform_indices = @transform_7, window_bounds = array<i64: 8, 128>}]} {
    %c0 = arith.constant 0 : index
    %c0_0 = arith.constant 0 : index
    %0 = vector.load %arg2[%c0, %c0_0] : memref<32x16xf32, #tpu.memory_space<vmem>>, vector<32x16xf32>
    %c0_1 = arith.constant 0 : index
    %c0_2 = arith.constant 0 : index
    %1 = vector.load %arg1[%c0_1, %c0_2] : memref<16x128xf32, #tpu.memory_space<vmem>>, vector<16x128xf32>
    %cst = arith.constant dense<0.000000e+00> : vector<32x128xf32>
    %2 = tpu.matmul %0, %1, %cst {dimension_numbers = #tpu.dot_dimension_numbers<[1], [0], [0], [1], [0, 0, 1, 1], [], []>} : vector<32x16xf32>, vector<16x128xf32>, vector<32x128xf32> -> vector<32x128xf32>
    %c0_3 = arith.constant 0 : index
    %c0_4 = arith.constant 0 : index
    %3 = vector.load %arg3[%c0_3, %c0_4] : memref<32x1xf32, #tpu.memory_space<vmem>>, vector<32x1xf32>
    %4 = vector.broadcast %3 : vector<32x1xf32> to vector<32x128xf32>
    %5 = arith.addf %2, %4 : vector<32x128xf32>
    %6 = math.tanh %5 : vector<32x128xf32>
    %c0_5 = arith.constant 0 : index
    %c0_6 = arith.constant 0 : index
    %7 = vector.load %arg4[%c0_5, %c0_6] : memref<32x32xf32, #tpu.memory_space<vmem>>, vector<32x32xf32>
    %cst_7 = arith.constant dense<0.000000e+00> : vector<32x128xf32>
    %8 = tpu.matmul %7, %6, %cst_7 {dimension_numbers = #tpu.dot_dimension_numbers<[1], [0], [0], [1], [0, 0, 1, 1], [], []>} : vector<32x32xf32>, vector<32x128xf32>, vector<32x128xf32> -> vector<32x128xf32>
    %c0_8 = arith.constant 0 : index
    %c0_9 = arith.constant 0 : index
    %9 = vector.load %arg5[%c0_8, %c0_9] : memref<32x1xf32, #tpu.memory_space<vmem>>, vector<32x1xf32>
    %10 = vector.broadcast %9 : vector<32x1xf32> to vector<32x128xf32>
    %11 = arith.addf %8, %10 : vector<32x128xf32>
    %12 = math.tanh %11 : vector<32x128xf32>
    %c0_10 = arith.constant 0 : index
    %c0_11 = arith.constant 0 : index
    %13 = vector.load %arg6[%c0_10, %c0_11] : memref<8x32xf32, #tpu.memory_space<vmem>>, vector<8x32xf32>
    %cst_12 = arith.constant dense<0.000000e+00> : vector<8x128xf32>
    %14 = tpu.matmul %13, %12, %cst_12 {dimension_numbers = #tpu.dot_dimension_numbers<[1], [0], [0], [1], [0, 0, 1, 1], [], []>} : vector<8x32xf32>, vector<32x128xf32>, vector<8x128xf32> -> vector<8x128xf32>
    %c0_13 = arith.constant 0 : index
    %c0_14 = arith.constant 0 : index
    %15 = vector.load %arg7[%c0_13, %c0_14] : memref<8x1xf32, #tpu.memory_space<vmem>>, vector<8x1xf32>
    %16 = vector.broadcast %15 : vector<8x1xf32> to vector<8x128xf32>
    %17 = arith.addf %14, %16 : vector<8x128xf32>
    %c0_15 = arith.constant 0 : index
    %c0_16 = arith.constant 0 : index
    %18 = vector.load %arg8[%c0_15, %c0_16] : memref<8x128xf32, #tpu.memory_space<vmem>>, vector<8x128xf32>
    tpu.vector_store %arg8[%c0_15, %c0_16], %17 {strides = array<i32>} : memref<8x128xf32, #tpu.memory_space<vmem>>, vector<8x128xf32>,
    return
  }
  func.func @transform_0(%arg0: i32) -> (i32, i32) {
    %c0_i32 = arith.constant 0 : i32
    %c0_i32_0 = arith.constant 0 : i32
    return %c0_i32, %arg0 : i32, i32
  }
  func.func @transform_1(%arg0: i32) -> (i32, i32) {
    %c0_i32 = arith.constant 0 : i32
    %c0_i32_0 = arith.constant 0 : i32
    %c0_i32_1 = arith.constant 0 : i32
    return %c0_i32, %c0_i32_0 : i32, i32
  }
  func.func @transform_2(%arg0: i32) -> (i32, i32) {
    %c0_i32 = arith.constant 0 : i32
    %c0_i32_0 = arith.constant 0 : i32
    %c0_i32_1 = arith.constant 0 : i32
    return %c0_i32, %c0_i32_0 : i32, i32
  }
  func.func @transform_3(%arg0: i32) -> (i32, i32) {
    %c0_i32 = arith.constant 0 : i32
    %c0_i32_0 = arith.constant 0 : i32
    %c0_i32_1 = arith.constant 0 : i32
    return %c0_i32, %c0_i32_0 : i32, i32
  }
  func.func @transform_4(%arg0: i32) -> (i32, i32) {
    %c0_i32 = arith.constant 0 : i32
    %c0_i32_0 = arith.constant 0 : i32
    %c0_i32_1 = arith.constant 0 : i32
    return %c0_i32, %c0_i32_0 : i32, i32
  }
  func.func @transform_5(%arg0: i32) -> (i32, i32) {
    %c0_i32 = arith.constant 0 : i32
    %c0_i32_0 = arith.constant 0 : i32
    %c0_i32_1 = arith.constant 0 : i32
    return %c0_i32, %c0_i32_0 : i32, i32
  }
  func.func @transform_6(%arg0: i32) -> (i32, i32) {
    %c0_i32 = arith.constant 0 : i32
    %c0_i32_0 = arith.constant 0 : i32
    %c0_i32_1 = arith.constant 0 : i32
    return %c0_i32, %c0_i32_0 : i32, i32
  }
  func.func @transform_7(%arg0: i32) -> (i32, i32) {
    %c0_i32 = arith.constant 0 : i32
    %c0_i32_0 = arith.constant 0 : i32
    return %c0_i32, %arg0 : i32, i32
  }
}

</mosaic_0001>

<llo_original>
// kernel: tpu_custom_call.1
$region0: #{tpu_custom_call.1}
  #allocation0 [shape = 'u32[]', space=smem, size = 0x4, offset = 0x4, fixed_abs, tag = 'smem constant byte address 0x4 - core index']
  #allocation1 [shape = 'u32[144,128]{1,0:T(1,128)}', space=vmem, size = 0x12000, scoped, tag = 'internal scratch']
  %s0 = inlined_call_operand.vmem [shape: f32[16,128], index: 0, kind: input, shape index: {}]
  %s1 = inlined_call_operand.vmem [shape: f32[32,16], index: 1, kind: input, shape index: {}]
  %s2 = inlined_call_operand.vmem [shape: f32[32,1], index: 2, kind: input, shape index: {}]
  %s3 = inlined_call_operand.vmem [shape: f32[32,32], index: 3, kind: input, shape index: {}]
  %s4 = inlined_call_operand.vmem [shape: f32[32,1], index: 4, kind: input, shape index: {}]
  %s5 = inlined_call_operand.vmem [shape: f32[8,32], index: 5, kind: input, shape index: {}]
  %s6 = inlined_call_operand.vmem [shape: f32[8,1], index: 6, kind: input, shape index: {}]
  %s7 = inlined_call_operand.hbm [shape: f32[8,128], index: 7, kind: output, shape index: {}]
  %s8 = sld [smem:[#allocation0]]
  $region38: #{tpu_custom_call.1} parent=0
    _
  %s10 = ssub.s32 1, %s8
  %s11 = scalar_select 0, %s10, %s8
  $region1: #{tpu_custom_call.1} parent=0
    #allocation2 [shape = 'u8[4096]{0}', space=vmem, size = 0x1000, scoped, tag = 'output window, operand 0, single buffered']
    #allocation3 [shape = 's32[1]{0}', space=sflag, size = 0x4, scoped, tag = 'scoped memory for tpu_custom_call.1']
    %12 = vsyncpa [#allocation3], 0
    // Predicated region
    $region2: #{tpu_custom_call.1} parent=1 // pred_check
      _
    $region3: #{tpu_custom_call.1} parent=1 // pred_check_branch
      %14 = sbr.rel (0) target = $region5
    $region4: #{tpu_custom_call.1} parent=1 // pred_region
      _
    $region5: #{tpu_custom_call.1} parent=1 // pred_fallthru
      _
    // Predicated region
    $region6: #{tpu_custom_call.1} parent=1 // pred_check
      _
    $region7: #{tpu_custom_call.1} parent=1 // pred_check_branch
      %16 = sbr.rel (0) target = $region9
    $region8: #{tpu_custom_call.1} parent=1 // pred_region
      _
    $region9: #{tpu_custom_call.1} parent=1 // pred_fallthru
      _
    // Predicated region
    $region10: #{tpu_custom_call.1} parent=1 // pred_check
      _
    $region11: #{tpu_custom_call.1} parent=1 // pred_check_branch
      %18 = sbr.rel (0) target = $region13
    $region12: #{tpu_custom_call.1} parent=1 // pred_region
      _
    $region13: #{tpu_custom_call.1} parent=1 // pred_fallthru
      _
    // Predicated region
    $region14: #{tpu_custom_call.1} parent=1 // pred_check
      _
    $region15: #{tpu_custom_call.1} parent=1 // pred_check_branch
      %20 = sbr.rel (0) target = $region17
    $region16: #{tpu_custom_call.1} parent=1 // pred_region
      _
    $region17: #{tpu_custom_call.1} parent=1 // pred_fallthru
      _
    // Predicated region
    $region18: #{tpu_custom_call.1} parent=1 // pred_check
      _
    $region19: #{tpu_custom_call.1} parent=1 // pred_check_branch
      %22 = sbr.rel (0) target = $region21
    $region20: #{tpu_custom_call.1} parent=1 // pred_region
      _
    $region21: #{tpu_custom_call.1} parent=1 // pred_fallthru
      _
    // Predicated region
    $region22: #{tpu_custom_call.1} parent=1 // pred_check
      _
    $region23: #{tpu_custom_call.1} parent=1 // pred_check_branch
      %24 = sbr.rel (0) target = $region25
    $region24: #{tpu_custom_call.1} parent=1 // pred_region
      _
    $region25: #{tpu_custom_call.1} parent=1 // pred_fallthru
      _
    // Predicated region
    $region26: #{tpu_custom_call.1} parent=1 // pred_check
      _
    $region27: #{tpu_custom_call.1} parent=1 // pred_check_branch
      %26 = sbr.rel (0) target = $region29
    $region28: #{tpu_custom_call.1} parent=1 // pred_region
      _
    $region29: #{tpu_custom_call.1} parent=1 // pred_fallthru
      _
    %v27 = vld [vmem:[%s1] sm:$0xff]
    %v28 = vld [vmem:[%s1 + $0x8] sm:$0xff]
    %v29 = vld [vmem:[%s1 + $0x10] sm:$0xff]
    %v30 = vld [vmem:[%s1 + $0x18] sm:$0xff]
    %v31 = vld [vmem:[%s0] sm:$0xff]
    %v32 = vld [vmem:[%s0 + $0x8] sm:$0xff]
    %v33 = vld [vmem:[%s2] sm:$0xff]
    %v34 = vld [vmem:[%s2 + $0x8] sm:$0xff]
    %v35 = vld [vmem:[%s2 + $0x10] sm:$0xff]
    %v36 = vld [vmem:[%s2 + $0x18] sm:$0xff]
    %38 = vset.pattern.permute.xlu0 0
    %39 = vperm.xlu0 %38, %v33
    %v40 = vpop.permute.xlu0 %39
    %43 = vset.pattern.permute.xlu0 0
    %44 = vperm.xlu0 %43, %v34
    %v45 = vpop.permute.xlu0 %44
    %48 = vset.pattern.permute.xlu0 0
    %49 = vperm.xlu0 %48, %v35
    %v50 = vpop.permute.xlu0 %49
    %53 = vset.pattern.permute.xlu0 0
    %54 = vperm.xlu0 %53, %v36
    %v55 = vpop.permute.xlu0 %54
    %vm57 = vcmask 130048
    %v59 = vsel %vm57, %v27, 0
    %v62 = vsel %vm57, %v28, 0
    %v65 = vsel %vm57, %v29, 0
    %v68 = vsel %vm57, %v30, 0
    %70 = vmatprep.subr.mxu0 0.0
    %71 = vmatpush1.msra.mxu0 %v31
    %72 = vmatprep.subr.mxu0 0.0
    %73 = vmatpush1.msra.mxu0 %v32
    %74 = vmatprep.subr.mxu0 0.0
    %75 = vmatpush1.msra.mxu0 0.0
    %76 = vmatprep.subr.mxu0 0.0
    %77 = vmatpush1.msra.mxu0 0.0
    %78 = vmatprep.subr.mxu0 0.0
    %79 = vmatpush1.msra.mxu0 0.0
    %80 = vmatprep.subr.mxu0 0.0
    %81 = vmatpush1.msra.mxu0 0.0
    %82 = vmatprep.subr.mxu0 0.0
    %83 = vmatpush1.msra.mxu0 0.0
    %84 = vmatprep.subr.mxu0 0.0
    %85 = vmatpush1.msra.mxu0 0.0
    %86 = vmatprep.subr.mxu0 0.0
    %87 = vmatpush1.msra.mxu0 0.0
    %88 = vmatprep.subr.mxu0 0.0
    %89 = vmatpush1.msra.mxu0 0.0
    %90 = vmatprep.subr.mxu0 0.0
    %91 = vmatpush1.msra.mxu0 0.0
    %92 = vmatprep.subr.mxu0 0.0
    %93 = vmatpush1.msra.mxu0 0.0
    %94 = vmatprep.subr.mxu0 0.0
    %95 = vmatpush1.msra.mxu0 0.0
    %96 = vmatprep.subr.mxu0 0.0
    %97 = vmatpush1.msra.mxu0 0.0
    %98 = vmatprep.subr.mxu0 0.0
    %99 = vmatpush1.msra.mxu0 0.0
    %100 = vmatprep.subr.mxu0 0.0
    %101 = vmatpush1.msra.mxu0 0.0
    %102 = vmatprep.subr.mxu0 0.0
    %103 = vmatpush1.msra.mxu0 0.0
    %104 = vmatprep.subr.mxu0 0.0
    %105 = vmatpush1.msra.mxu0 0.0
    %106 = vmatprep.subr.mxu0 0.0
    %107 = vmatpush1.msra.mxu0 0.0
    %108 = vmatprep.subr.mxu0 0.0
    %109 = vmatpush1.msra.mxu0 0.0
    %110 = vmatprep.subr.mxu0 0.0
    %111 = vmatpush1.msra.mxu0 0.0
    %112 = vmatprep.subr.mxu0 0.0
    %113 = vmatpush1.msra.mxu0 0.0
    %114 = vmatprep.subr.mxu0 0.0
    %115 = vmatpush1.msra.mxu0 0.0
    %116 = vmatprep.subr.mxu0 0.0
    %117 = vmatpush1.msra.mxu0 0.0
    %118 = vmatprep.subr.mxu0 0.0
    %119 = vmatpush1.msra.mxu0 0.0
    %120 = vmatprep.subr.mxu0 0.0
    %121 = vmatpush1.msra.mxu0 0.0
    %122 = vmatprep.subr.mxu0 0.0
    %123 = vmatpush1.msra.mxu0 0.0
    %124 = vmatprep.subr.mxu0 0.0
    %125 = vmatpush1.msra.mxu0 0.0
    %126 = vmatprep.subr.mxu0 0.0
    %127 = vmatpush1.msra.mxu0 0.0
    %128 = vmatprep.subr.mxu0 0.0
    %129 = vmatpush1.msra.mxu0 0.0
    %130 = vmatprep.subr.mxu0 0.0
    %131 = vmatpush1.msra.mxu0 0.0
    %132 = vmatprep.subr.mxu0 0.0
    %133 = vmatpush1.msra.mxu0 0.0
    %134 = vmatprep.mubr.f32.mxu0 0.0
    %135 = vmatmul.mubr.f32.gmra.mrb[0].mxu0 %v59
    %v136 = vpop.f32.mrb[0].mxu0
    %v137 = vadd.f32 %v40, %v136
    %v138 = vpop.f32.mrb[0].mxu0
    %139 = vmatprep.mubr.f32.mxu0 0.0
    %140 = vmatmul.mubr.f32.gmra.mrb[0].mxu0 %v62
    %v141 = vpop.f32.mrb[0].mxu0
    %v142 = vadd.f32 %v45, %v141
    %v143 = vpop.f32.mrb[0].mxu0
    %144 = vmatprep.mubr.f32.mxu0 0.0
    %145 = vmatmul.mubr.f32.gmra.mrb[0].mxu0 %v65
    %v146 = vpop.f32.mrb[0].mxu0
    %v147 = vadd.f32 %v50, %v146
    %v148 = vpop.f32.mrb[0].mxu0
    %149 = vmatprep.mubr.f32.mxu0 0.0
    %150 = vmatmul.mubr.f32.gmra.mrb[0].mxu0 %v68
    %v151 = vpop.f32.mrb[0].mxu0
    %v152 = vadd.f32 %v55, %v151
    %v153 = vpop.f32.mrb[0].mxu0
    %154 = vdwg.mxu0
    %v155 = vtanh.pop %v137
    %v156 = vtanh.pop %v142
    %v157 = vtanh.pop %v147
    %v158 = vtanh.pop %v152
    %v159 = vld [vmem:[%s3] sm:$0xff]
    %v160 = vld [vmem:[%s3 + $0x8] sm:$0xff]
    %v161 = vld [vmem:[%s3 + $0x10] sm:$0xff]
    %v162 = vld [vmem:[%s3 + $0x18] sm:$0xff]
    %v163 = vld [vmem:[%s4] sm:$0xff]
    %v164 = vld [vmem:[%s4 + $0x8] sm:$0xff]
    %v165 = vld [vmem:[%s4 + $0x10] sm:$0xff]
    %v166 = vld [vmem:[%s4 + $0x18] sm:$0xff]
    %168 = vset.pattern.permute.xlu0 0
    %169 = vperm.xlu0 %168, %v163
    %v170 = vpop.permute.xlu0 %169
    %173 = vset.pattern.permute.xlu0 0
    %174 = vperm.xlu0 %173, %v164
    %v175 = vpop.permute.xlu0 %174
    %178 = vset.pattern.permute.xlu0 0
    %179 = vperm.xlu0 %178, %v165
    %v180 = vpop.permute.xlu0 %179
    %183 = vset.pattern.permute.xlu0 0
    %184 = vperm.xlu0 %183, %v166
    %v185 = vpop.permute.xlu0 %184
    %vm187 = vcmask 261120
    %v189 = vsel %vm187, %v159, 0
    %v192 = vsel %vm187, %v160, 0
    %v195 = vsel %vm187, %v161, 0
    %v198 = vsel %vm187, %v162, 0
    %200 = vmatprep.subr.mxu0 0.0
    %201 = vmatpush1.msra.mxu0 %v155
    %202 = vmatprep.subr.mxu0 0.0
    %203 = vmatpush1.msra.mxu0 %v156
    %204 = vmatprep.subr.mxu0 0.0
    %205 = vmatpush1.msra.mxu0 %v157
    %206 = vmatprep.subr.mxu0 0.0
    %207 = vmatpush1.msra.mxu0 %v158
    %208 = vmatprep.subr.mxu0 0.0
    %209 = vmatpush1.msra.mxu0 0.0
    %210 = vmatprep.subr.mxu0 0.0
    %211 = vmatpush1.msra.mxu0 0.0
    %212 = vmatprep.subr.mxu0 0.0
    %213 = vmatpush1.msra.mxu0 0.0
    %214 = vmatprep.subr.mxu0 0.0
    %215 = vmatpush1.msra.mxu0 0.0
    %216 = vmatprep.subr.mxu0 0.0
    %217 = vmatpush1.msra.mxu0 0.0
    %218 = vmatprep.subr.mxu0 0.0
    %219 = vmatpush1.msra.mxu0 0.0
    %220 = vmatprep.subr.mxu0 0.0
    %221 = vmatpush1.msra.mxu0 0.0
    %222 = vmatprep.subr.mxu0 0.0
    %223 = vmatpush1.msra.mxu0 0.0
    %224 = vmatprep.subr.mxu0 0.0
    %225 = vmatpush1.msra.mxu0 0.0
    %226 = vmatprep.subr.mxu0 0.0
    %227 = vmatpush1.msra.mxu0 0.0
    %228 = vmatprep.subr.mxu0 0.0
    %229 = vmatpush1.msra.mxu0 0.0
    %230 = vmatprep.subr.mxu0 0.0
    %231 = vmatpush1.msra.mxu0 0.0
    %232 = vmatprep.subr.mxu0 0.0
    %233 = vmatpush1.msra.mxu0 0.0
    %234 = vmatprep.subr.mxu0 0.0
    %235 = vmatpush1.msra.mxu0 0.0
    %236 = vmatprep.subr.mxu0 0.0
    %237 = vmatpush1.msra.mxu0 0.0
    %238 = vmatprep.subr.mxu0 0.0
    %239 = vmatpush1.msra.mxu0 0.0
    %240 = vmatprep.subr.mxu0 0.0
    %241 = vmatpush1.msra.mxu0 0.0
    %242 = vmatprep.subr.mxu0 0.0
    %243 = vmatpush1.msra.mxu0 0.0
    %244 = vmatprep.subr.mxu0 0.0
    %245 = vmatpush1.msra.mxu0 0.0
    %246 = vmatprep.subr.mxu0 0.0
    %247 = vmatpush1.msra.mxu0 0.0
    %248 = vmatprep.subr.mxu0 0.0
    %249 = vmatpush1.msra.mxu0 0.0
    %250 = vmatprep.subr.mxu0 0.0
    %251 = vmatpush1.msra.mxu0 0.0
    %252 = vmatprep.subr.mxu0 0.0
    %253 = vmatpush1.msra.mxu0 0.0
    %254 = vmatprep.subr.mxu0 0.0
    %255 = vmatpush1.msra.mxu0 0.0
    %256 = vmatprep.subr.mxu0 0.0
    %257 = vmatpush1.msra.mxu0 0.0
    %258 = vmatprep.subr.mxu0 0.0
    %259 = vmatpush1.msra.mxu0 0.0
    %260 = vmatprep.subr.mxu0 0.0
    %261 = vmatpush1.msra.mxu0 0.0
    %262 = vmatprep.subr.mxu0 0.0
    %263 = vmatpush1.msra.mxu0 0.0
    %264 = vmatprep.mubr.f32.mxu0 0.0
    %265 = vmatmul.mubr.f32.gmra.mrb[0].mxu0 %v189
    %v266 = vpop.f32.mrb[0].mxu0
    %v267 = vadd.f32 %v170, %v266
    %v268 = vpop.f32.mrb[0].mxu0
    %269 = vmatprep.mubr.f32.mxu0 0.0
    %270 = vmatmul.mubr.f32.gmra.mrb[0].mxu0 %v192
    %v271 = vpop.f32.mrb[0].mxu0
    %v272 = vadd.f32 %v175, %v271
    %v273 = vpop.f32.mrb[0].mxu0
    %274 = vmatprep.mubr.f32.mxu0 0.0
    %275 = vmatmul.mubr.f32.gmra.mrb[0].mxu0 %v195
    %v276 = vpop.f32.mrb[0].mxu0
    %v277 = vadd.f32 %v180, %v276
    %v278 = vpop.f32.mrb[0].mxu0
    %279 = vmatprep.mubr.f32.mxu0 0.0
    %280 = vmatmul.mubr.f32.gmra.mrb[0].mxu0 %v198
    %v281 = vpop.f32.mrb[0].mxu0
    %v282 = vadd.f32 %v185, %v281
    %v283 = vpop.f32.mrb[0].mxu0
    %284 = vdwg.mxu0
    %v285 = vtanh.pop %v267
    %v286 = vtanh.pop %v272
    %v287 = vtanh.pop %v277
    %v288 = vtanh.pop %v282
    %v289 = vld [vmem:[%s5] sm:$0xff]
    %v290 = vld [vmem:[%s6] sm:$0xff]
    %292 = vset.pattern.permute.xlu0 0
    %293 = vperm.xlu0 %292, %v290
    %v294 = vpop.permute.xlu0 %293
    %v297 = vsel %vm187, %v289, 0
    %299 = vmatprep.subr.mxu0 0.0
    %300 = vmatpush1.msra.mxu0 %v285
    %301 = vmatprep.subr.mxu0 0.0
    %302 = vmatpush1.msra.mxu0 %v286
    %303 = vmatprep.subr.mxu0 0.0
    %304 = vmatpush1.msra.mxu0 %v287
    %305 = vmatprep.subr.mxu0 0.0
    %306 = vmatpush1.msra.mxu0 %v288
    %307 = vmatprep.subr.mxu0 0.0
    %308 = vmatpush1.msra.mxu0 0.0
    %309 = vmatprep.subr.mxu0 0.0
    %310 = vmatpush1.msra.mxu0 0.0
    %311 = vmatprep.subr.mxu0 0.0
    %312 = vmatpush1.msra.mxu0 0.0
    %313 = vmatprep.subr.mxu0 0.0
    %314 = vmatpush1.msra.mxu0 0.0
    %315 = vmatprep.subr.mxu0 0.0
    %316 = vmatpush1.msra.mxu0 0.0
    %317 = vmatprep.subr.mxu0 0.0
    %318 = vmatpush1.msra.mxu0 0.0
    %319 = vmatprep.subr.mxu0 0.0
    %320 = vmatpush1.msra.mxu0 0.0
    %321 = vmatprep.subr.mxu0 0.0
    %322 = vmatpush1.msra.mxu0 0.0
    %323 = vmatprep.subr.mxu0 0.0
    %324 = vmatpush1.msra.mxu0 0.0
    %325 = vmatprep.subr.mxu0 0.0
    %326 = vmatpush1.msra.mxu0 0.0
    %327 = vmatprep.subr.mxu0 0.0
    %328 = vmatpush1.msra.mxu0 0.0
    %329 = vmatprep.subr.mxu0 0.0
    %330 = vmatpush1.msra.mxu0 0.0
    %331 = vmatprep.subr.mxu0 0.0
    %332 = vmatpush1.msra.mxu0 0.0
    %333 = vmatprep.subr.mxu0 0.0
    %334 = vmatpush1.msra.mxu0 0.0
    %335 = vmatprep.subr.mxu0 0.0
    %336 = vmatpush1.msra.mxu0 0.0
    %337 = vmatprep.subr.mxu0 0.0
    %338 = vmatpush1.msra.mxu0 0.0
    %339 = vmatprep.subr.mxu0 0.0
    %340 = vmatpush1.msra.mxu0 0.0
    %341 = vmatprep.subr.mxu0 0.0
    %342 = vmatpush1.msra.mxu0 0.0
    %343 = vmatprep.subr.mxu0 0.0
    %344 = vmatpush1.msra.mxu0 0.0
    %345 = vmatprep.subr.mxu0 0.0
    %346 = vmatpush1.msra.mxu0 0.0
    %347 = vmatprep.subr.mxu0 0.0
    %348 = vmatpush1.msra.mxu0 0.0
    %349 = vmatprep.subr.mxu0 0.0
    %350 = vmatpush1.msra.mxu0 0.0
    %351 = vmatprep.subr.mxu0 0.0
    %352 = vmatpush1.msra.mxu0 0.0
    %353 = vmatprep.subr.mxu0 0.0
    %354 = vmatpush1.msra.mxu0 0.0
    %355 = vmatprep.subr.mxu0 0.0
    %356 = vmatpush1.msra.mxu0 0.0
    %357 = vmatprep.subr.mxu0 0.0
    %358 = vmatpush1.msra.mxu0 0.0
    %359 = vmatprep.subr.mxu0 0.0
    %360 = vmatpush1.msra.mxu0 0.0
    %361 = vmatprep.subr.mxu0 0.0
    %362 = vmatpush1.msra.mxu0 0.0
    %363 = vmatprep.mubr.f32.mxu0 0.0
    %364 = vmatmul.mubr.f32.gmra.mrb[0].mxu0 %v297
    %v365 = vpop.f32.mrb[0].mxu0
    %v366 = vadd.f32 %v294, %v365
    %v367 = vpop.f32.mrb[0].mxu0
    %368 = vdwg.mxu0
    %369 = vst [vmem:[#allocation2] sm:$0xff] %v366
    // Predicated region
    $region30: #{tpu_custom_call.1} parent=1 // pred_check
      _
    $region31: #{tpu_custom_call.1} parent=1 // pred_check_branch
      %371 = sbr.rel (0) target = $region33
    $region32: #{tpu_custom_call.1} parent=1 // pred_region
      %s373 = ssub.s32 128, 128
      %374 = vsyncadd [#allocation3], %s373
      %s376 = sshll.u32 [#allocation2], 4
      %s377 = int_to_ptr.vmem [resolvable:$true] %s376
      %379 = dma.vmem_to_hbm [thread:$0]  %s377, 128, %s7, [#allocation3]
    $region33: #{tpu_custom_call.1} parent=1 // pred_fallthru
      _
    // Predicated region
    $region34: #{tpu_custom_call.1} parent=1 // pred_check
      _
    $region35: #{tpu_custom_call.1} parent=1 // pred_check_branch
      %381 = sbr.rel (0) target = $region37
    $region36: #{tpu_custom_call.1} parent=1 // pred_region
      %382 = dma.done [#allocation3], 128
    $region37: #{tpu_custom_call.1} parent=1 // pred_fallthru
      _
    %383 = vsyncpa [#allocation3], 1

</llo_original>
